<compile_context>
chip_gen: v7x
topology: tpu7x:2x2x1
jax: 0.10.0
libtpu: 0.0.40
codegen_flags: <defaults>
</compile_context>

<pallas_src>
import functools

import jax
import jax.numpy as jnp
import numpy as np
from jax import lax
from jax.experimental import pallas as pl
from jax.experimental.pallas import tpu as pltpu

LANE = 128
SUBLANE = 8
UNROLL_LANES = 8 * LANE          # tile granularity that keeps n_chunks % 8 == 0
TS_CAP = 64 * 1024               # hard cap on lanes per grid step
MAX_CARRY_ROW_VREGS = 8          # carry accumulators in vregs only if ceil(BC/8) <= 8


def _round_up(x, m):
    return -(-x // m) * m


def _cdiv(a, b):
    return -(-a // b)


@functools.lru_cache(maxsize=None)
def _chip_info():
    """Returns (physical VMEM bytes, #TensorCores to split the reduction over)."""
    vmem_bytes = 64 * 1024 * 1024            # conservative default (v7x-sized)
    try:
        info = pltpu.get_tpu_info()
        vmem_bytes = int(getattr(info, "vmem_capacity_bytes", vmem_bytes))
    except Exception:
        pass
    vmem_bytes = max(32 * 1024 * 1024, min(vmem_bytes, 128 * 1024 * 1024))

    num_tc = 1                               # v5e / v6e: one TensorCore per chip
    try:
        kind = jax.devices()[0].device_kind.lower()
        if "7" in kind:                      # v7x: two TensorCores per chip
            num_tc = 2
    except Exception:
        pass
    if num_tc == 2:
        # Never reuse a 128 MiB-class budget on v7x (64 MiB physical VMEM/TC).
        vmem_bytes = min(vmem_bytes, 64 * 1024 * 1024)
    return vmem_bytes, num_tc


def _make_gdl_kernel(S, TS, k_tiles, unroll, vreg_carry):
    """Kernel accumulating lane-wise partial sums of t, p and p*t over S."""
    n_chunks = TS // LANE

    def kernel(p_ref, t_ref, out_ref):
        c = pl.program_id(0)
        k = pl.program_id(1)

        @pl.when(k == 0)
        def _init():
            out_ref[...] = jnp.zeros_like(out_ref)

        g0 = (c * k_tiles + k) * TS          # intended global start column of tile
        rows = p_ref.shape[0]

        def load(j):
            off = pl.multiple_of(j * LANE, LANE)
            p = p_ref[:, pl.ds(off, LANE)].astype(jnp.float32)
            t = t_ref[:, pl.ds(off, LANE)].astype(jnp.float32)
            return p, t

        # ---- fast path: every column of this tile is in range (unmasked) ----
        @pl.when(g0 + TS <= S)
        def _full_tile():
            if vreg_carry:
                def body(j, carry):
                    st_a, sp_a, spt_a = carry
                    p, t = load(j)
                    return st_a + t, sp_a + p, spt_a + p * t

                zero = jnp.zeros((rows, LANE), jnp.float32)
                st_a, sp_a, spt_a = lax.fori_loop(
                    0, n_chunks, body, (zero, zero, zero), unroll=unroll)
                out_ref[0] += st_a
                out_ref[1] += sp_a
                out_ref[2] += spt_a
            else:
                # Large B*C: accumulate straight into VMEM (ld/st slots have
                # plenty of slack; carrying 3*ceil(BC/8) vregs would spill).
                @pl.loop(0, n_chunks)
                def _(j):
                    p, t = load(j)
                    out_ref[0] += t
                    out_ref[1] += p
                    out_ref[2] += p * t

        # ---- tail path: the single ragged tile -> mask out-of-range lanes ----
        @pl.when(jnp.logical_and(g0 < S, g0 + TS > S))
        def _tail_tile():
            col = lax.broadcasted_iota(jnp.int32, (rows, LANE), 1)

            @pl.loop(0, n_chunks)
            def _(j):
                p, t = load(j)
                valid = (g0 + j * LANE + col) < S
                p = jnp.where(valid, p, 0.0)
                t = jnp.where(valid, t, 0.0)
                out_ref[0] += t
                out_ref[1] += p
                out_ref[2] += p * t

        # Tiles with g0 >= S (possible only with the 2-core split) contribute
        # nothing; their DMA is clamped to the last valid block by the index_map.

    return kernel


@jax.jit
def generalized_dice_loss(predict, target):
    """predict, target: (B, C, H, W) arrays -> scalar float32 loss."""
    B, C, H, W = predict.shape
    S = H * W
    BC = B * C

    vmem_bytes, ncores = _chip_info()
    vmem_input_budget = vmem_bytes * 3 // 8          # double-buffered p & t blocks
    vmem_limit = min(vmem_bytes * 3 // 4, 96 * 1024 * 1024)

    # Largest spatial tile keeping 2 inputs x 2 pipeline buffers in budget,
    # using the real input itemsizes (bf16 inputs are welcome; they are
    # upcast per-chunk in-kernel, never in the wrapper).
    bytes_per_lane_col = 2 * BC * (jnp.dtype(predict.dtype).itemsize
                                   + jnp.dtype(target.dtype).itemsize)
    ts_budget = max(LANE, vmem_input_budget // bytes_per_lane_col // LANE * LANE)
    ts_max = min(ts_budget, TS_CAP)
    if ts_max >= UNROLL_LANES:                       # keep n_chunks % 8 == 0
        ts_max = ts_max // UNROLL_LANES * UNROLL_LANES

    # Fewest grid steps per core that fit the budget, then the smallest
    # covering tile -> minimal overshoot of the ragged spatial tail.
    k_tiles = _cdiv(S, ncores * ts_max)
    ts_fit = _round_up(_cdiv(S, ncores * k_tiles), LANE)
    TS = _round_up(ts_fit, UNROLL_LANES) if ts_fit >= UNROLL_LANES else ts_fit
    n_chunks = TS // LANE

    # Vreg budget: (3 + 2*unroll) * ceil(BC/8) live vregs kept ≲ 48.
    rows_vregs = _cdiv(BC, SUBLANE)
    vreg_carry = rows_vregs <= MAX_CARRY_ROW_VREGS
    unroll = max(1, min(8, n_chunks, (48 // rows_vregs - 3) // 2)) if vreg_carry else 1

    p2 = predict.reshape(BC, S)                      # no HBM pad copy
    t2 = target.reshape(BC, S)

    last_block = _cdiv(S, TS) - 1
    in_spec = pl.BlockSpec(
        (BC, TS), lambda c, k: (0, jnp.minimum(c * k_tiles + k, last_block)))
    out_spec = pl.BlockSpec((None, 3, BC, LANE), lambda c, k: (c, 0, 0, 0))

    partials = pl.pallas_call(
        _make_gdl_kernel(S, TS, k_tiles, unroll, vreg_carry),
        out_shape=jax.ShapeDtypeStruct((ncores, 3, BC, LANE), jnp.float32),
        grid_spec=pltpu.PrefetchScalarGridSpec(
            num_scalar_prefetch=0,
            grid=(ncores, k_tiles),
            in_specs=[in_spec, in_spec],
            out_specs=out_spec,
        ),
        compiler_params=pltpu.CompilerParams(
            dimension_semantics=("parallel", "arbitrary"),
            vmem_limit_bytes=vmem_limit,
        ),
    )(p2, t2)

    # Single tiny finalize: one cross-lane reduce of the stacked partial sums,
    # then the per-(b, c) weighting exactly as in the PyTorch reference.
    sums = jnp.sum(partials, axis=(0, 3))            # (3, B*C)
    st = sums[0].reshape(B, C)                       # sum(target)
    sp = sums[1].reshape(B, C)                       # sum(predict)
    spt = sums[2].reshape(B, C)                      # sum(predict*target)

    w = 1.0 / (st + 1e-10) ** 2
    intersection = w * spt
    union = w * (sp + st)
    num = jnp.sum(intersection, axis=-1) + 1e-10
    den = jnp.sum(union, axis=-1) + 1e-10
    return jnp.mean(1.0 - 2.0 * num / den)


def _reference(predict, target):
    # Pure-JAX reference mirroring the PyTorch forward exactly.
    st = jnp.einsum('bcwh->bc', target).astype(jnp.float32)
    w = 1.0 / (st + 1e-10) ** 2
    intersection = w * jnp.einsum('bcwh,bcwh->bc', predict, target)
    union = w * (jnp.einsum('bcwh->bc', predict) + jnp.einsum('bcwh->bc', target))
    loss = 1.0 - 2.0 * (jnp.sum(intersection, -1) + 1e-10) / (jnp.sum(union, -1) + 1e-10)
    return jnp.mean(loss)


def _make_inputs(key, B, C, H, W):
    kp, kt = jax.random.split(key)
    logits = jax.random.normal(kp, (B, C, H, W), dtype=jnp.float32)
    predict = jax.nn.softmax(logits, axis=1)                  # soft probabilities
    labels = jax.random.randint(kt, (B, H, W), 0, C)
    target = jax.nn.one_hot(labels, C, axis=1, dtype=jnp.float32)
    return predict, target


if __name__ == "__main__":
    key = jax.random.PRNGKey(0)
    cases = [
        (2, 4, 16, 16),    # lane-aligned S: unmasked (fast) path
        (2, 3, 9, 7),      # ragged S and B*C not a multiple of 8: masked tail path
        (2, 40, 16, 16),   # large B*C: VMEM-accumulate path
    ]
    for i, (B, C, H, W) in enumerate(cases):
        key, sub = jax.random.split(key)
        predict, target = _make_inputs(sub, B, C, H, W)
        out = jax.block_until_ready(generalized_dice_loss(predict, target))
        ref = jax.block_until_ready(_reference(predict, target))
        assert np.allclose(np.asarray(out), np.asarray(ref),
                           rtol=1e-5, atol=1e-6), (i, out, ref)

    print("KERNEL_OK")
</pallas_src>

<mosaic_0001>
module attributes {stable_mosaic.version = 11 : i64} {
  func.func @kernel(%arg0: i32, %arg1: i32, %arg2: memref<8x256xf32, #tpu.memory_space<vmem>>, %arg3: memref<8x256xf32, #tpu.memory_space<vmem>>, %arg4: memref<1x3x8x128xf32, #tpu.memory_space<vmem>>) attributes {dimension_semantics = [#tpu.dimension_semantics<parallel>, #tpu.dimension_semantics<arbitrary>], iteration_bounds = array<i64: 1, 1>, scalar_prefetch = 0 : i64, scratch_operands = 0 : i64, tpu.core_type = #tpu.core_type<tc>, window_params = [{transform_indices = @transform_0, window_bounds = array<i64: 8, 256>}, {transform_indices = @transform_1, window_bounds = array<i64: 8, 256>}, {transform_indices = @transform_2, window_bounds = array<i64: 1, 3, 8, 128>}]} {
    %c0_i32 = arith.constant 0 : i32
    %0 = arith.cmpi eq, %arg1, %c0_i32 : i32
    %1 = arith.extui %0 : i1 to i32
    %c0_i32_0 = arith.constant 0 : i32
    %2 = arith.cmpi ne, %1, %c0_i32_0 : i32
    scf.if %2 {
      %cst = arith.constant 0.000000e+00 : f32
      %16 = vector.broadcast %cst : f32 to vector<3x8x128xf32>
      %c0 = arith.constant 0 : index
      %c0_8 = arith.constant 0 : index
      %c0_9 = arith.constant 0 : index
      %c0_10 = arith.constant 0 : index
      %17 = vector.load %arg4[%c0, %c0_8, %c0_9, %c0_10] : memref<1x3x8x128xf32, #tpu.memory_space<vmem>>, vector<1x3x8x128xf32>
      %18 = vector.shape_cast %17 : vector<1x3x8x128xf32> to vector<3x8x128xf32>
      %19 = vector.shape_cast %16 : vector<3x8x128xf32> to vector<1x3x8x128xf32>
      tpu.vector_store %arg4[%c0, %c0_8, %c0_9, %c0_10], %19 {strides = array<i32>} : memref<1x3x8x128xf32, #tpu.memory_space<vmem>>, vector<1x3x8x128xf32>,
    } else {
    }
    %c1_i32 = arith.constant 1 : i32
    %3 = arith.muli %arg0, %c1_i32 : i32
    %4 = arith.addi %3, %arg1 : i32
    %c256_i32 = arith.constant 256 : i32
    %5 = arith.muli %4, %c256_i32 : i32
    %c256_i32_1 = arith.constant 256 : i32
    %6 = arith.addi %5, %c256_i32_1 : i32
    %c256_i32_2 = arith.constant 256 : i32
    %7 = arith.cmpi sle, %6, %c256_i32_2 : i32
    %8 = arith.extui %7 : i1 to i32
    %c0_i32_3 = arith.constant 0 : i32
    %9 = arith.cmpi ne, %8, %c0_i32_3 : i32
    scf.if %9 {
      %cst = arith.constant 0.000000e+00 : f32
      %16 = vector.broadcast %cst : f32 to vector<8x128xf32>
      %c0_i32_8 = arith.constant 0 : i32
      %c128_i32 = arith.constant 128 : i32
      %17 = arith.muli %c0_i32_8, %c128_i32 : i32
      %18 = tpu.assume_multiple %17, 128 : i32
      %c0 = arith.constant 0 : index
      %19 = arith.index_cast %18 : i32 to index
      %20 = vector.load %arg2[%c0, %19] : memref<8x256xf32, #tpu.memory_space<vmem>>, vector<8x128xf32>
      %c0_9 = arith.constant 0 : index
      %21 = arith.index_cast %18 : i32 to index
      %22 = vector.load %arg3[%c0_9, %21] : memref<8x256xf32, #tpu.memory_space<vmem>>, vector<8x128xf32>
      %23 = arith.addf %16, %22 : vector<8x128xf32>
      %24 = arith.addf %16, %20 : vector<8x128xf32>
      %25 = arith.mulf %20, %22 : vector<8x128xf32>
      %26 = arith.addf %16, %25 : vector<8x128xf32>
      %c1_i32_10 = arith.constant 1 : i32
      %c128_i32_11 = arith.constant 128 : i32
      %27 = arith.muli %c1_i32_10, %c128_i32_11 : i32
      %28 = tpu.assume_multiple %27, 128 : i32
      %c0_12 = arith.constant 0 : index
      %29 = arith.index_cast %28 : i32 to index
      %30 = vector.load %arg2[%c0_12, %29] : memref<8x256xf32, #tpu.memory_space<vmem>>, vector<8x128xf32>
      %c0_13 = arith.constant 0 : index
      %31 = arith.index_cast %28 : i32 to index
      %32 = vector.load %arg3[%c0_13, %31] : memref<8x256xf32, #tpu.memory_space<vmem>>, vector<8x128xf32>
      %33 = arith.addf %23, %32 : vector<8x128xf32>
      %34 = arith.addf %24, %30 : vector<8x128xf32>
      %35 = arith.mulf %30, %32 : vector<8x128xf32>
      %36 = arith.addf %26, %35 : vector<8x128xf32>
      %c2_i32 = arith.constant 2 : i32
      %c0_14 = arith.constant 0 : index
      %c0_15 = arith.constant 0 : index
      %c0_16 = arith.constant 0 : index
      %c0_17 = arith.constant 0 : index
      %37 = vector.load %arg4[%c0_14, %c0_15, %c0_16, %c0_17] : memref<1x3x8x128xf32, #tpu.memory_space<vmem>>, vector<1x1x8x128xf32>
      %38 = vector.shape_cast %37 : vector<1x1x8x128xf32> to vector<8x128xf32>
      %39 = arith.addf %38, %33 : vector<8x128xf32>
      %c0_18 = arith.constant 0 : index
      %c0_19 = arith.constant 0 : index
      %c0_20 = arith.constant 0 : index
      %c0_21 = arith.constant 0 : index
      %40 = vector.load %arg4[%c0_18, %c0_19, %c0_20, %c0_21] : memref<1x3x8x128xf32, #tpu.memory_space<vmem>>, vector<1x1x8x128xf32>
      %41 = vector.shape_cast %40 : vector<1x1x8x128xf32> to vector<8x128xf32>
      %42 = vector.shape_cast %39 : vector<8x128xf32> to vector<1x1x8x128xf32>
      tpu.vector_store %arg4[%c0_18, %c0_19, %c0_20, %c0_21], %42 {strides = array<i32>} : memref<1x3x8x128xf32, #tpu.memory_space<vmem>>, vector<1x1x8x128xf32>,
      %c0_22 = arith.constant 0 : index
      %c1 = arith.constant 1 : index
      %c0_23 = arith.constant 0 : index
      %c0_24 = arith.constant 0 : index
      %43 = vector.load %arg4[%c0_22, %c1, %c0_23, %c0_24] : memref<1x3x8x128xf32, #tpu.memory_space<vmem>>, vector<1x1x8x128xf32>
      %44 = vector.shape_cast %43 : vector<1x1x8x128xf32> to vector<8x128xf32>
      %45 = arith.addf %44, %34 : vector<8x128xf32>
      %c0_25 = arith.constant 0 : index
      %c1_26 = arith.constant 1 : index
      %c0_27 = arith.constant 0 : index
      %c0_28 = arith.constant 0 : index
      %46 = vector.load %arg4[%c0_25, %c1_26, %c0_27, %c0_28] : memref<1x3x8x128xf32, #tpu.memory_space<vmem>>, vector<1x1x8x128xf32>
      %47 = vector.shape_cast %46 : vector<1x1x8x128xf32> to vector<8x128xf32>
      %48 = vector.shape_cast %45 : vector<8x128xf32> to vector<1x1x8x128xf32>
      tpu.vector_store %arg4[%c0_25, %c1_26, %c0_27, %c0_28], %48 {strides = array<i32>} : memref<1x3x8x128xf32, #tpu.memory_space<vmem>>, vector<1x1x8x128xf32>,
      %c0_29 = arith.constant 0 : index
      %c2 = arith.constant 2 : index
      %c0_30 = arith.constant 0 : index
      %c0_31 = arith.constant 0 : index
      %49 = vector.load %arg4[%c0_29, %c2, %c0_30, %c0_31] : memref<1x3x8x128xf32, #tpu.memory_space<vmem>>, vector<1x1x8x128xf32>
      %50 = vector.shape_cast %49 : vector<1x1x8x128xf32> to vector<8x128xf32>
      %51 = arith.addf %50, %36 : vector<8x128xf32>
      %c0_32 = arith.constant 0 : index
      %c2_33 = arith.constant 2 : index
      %c0_34 = arith.constant 0 : index
      %c0_35 = arith.constant 0 : index
      %52 = vector.load %arg4[%c0_32, %c2_33, %c0_34, %c0_35] : memref<1x3x8x128xf32, #tpu.memory_space<vmem>>, vector<1x1x8x128xf32>
      %53 = vector.shape_cast %52 : vector<1x1x8x128xf32> to vector<8x128xf32>
      %54 = vector.shape_cast %51 : vector<8x128xf32> to vector<1x1x8x128xf32>
      tpu.vector_store %arg4[%c0_32, %c2_33, %c0_34, %c0_35], %54 {strides = array<i32>} : memref<1x3x8x128xf32, #tpu.memory_space<vmem>>, vector<1x1x8x128xf32>,
    } else {
    }
    %c256_i32_4 = arith.constant 256 : i32
    %10 = arith.cmpi slt, %5, %c256_i32_4 : i32
    %c256_i32_5 = arith.constant 256 : i32
    %11 = arith.addi %5, %c256_i32_5 : i32
    %c256_i32_6 = arith.constant 256 : i32
    %12 = arith.cmpi sgt, %11, %c256_i32_6 : i32
    %13 = arith.andi %10, %12 : i1
    %14 = arith.extui %13 : i1 to i32
    %c0_i32_7 = arith.constant 0 : i32
    %15 = arith.cmpi ne, %14, %c0_i32_7 : i32
    scf.if %15 {
      %16 = tpu.iota {dimensions = array<i32: 1>} : vector<8x128xi32>
      %c0_i32_8 = arith.constant 0 : i32
      %c2_i32 = arith.constant 2 : i32
      %17 = arith.addi %c0_i32_8, %c2_i32 : i32
      %c1_i32_9 = arith.constant 1 : i32
      scf.for %arg5 = %c0_i32_8 to %17 step %c1_i32_9  : i32 {
        %c1_i32_11 = arith.constant 1 : i32
        %18 = arith.muli %arg5, %c1_i32_11 : i32
        %c0_i32_12 = arith.constant 0 : i32
        %19 = arith.addi %c0_i32_12, %18 : i32
        %c128_i32 = arith.constant 128 : i32
        %20 = arith.muli %19, %c128_i32 : i32
        %21 = tpu.assume_multiple %20, 128 : i32
        %c0 = arith.constant 0 : index
        %22 = arith.index_cast %21 : i32 to index
        %23 = vector.load %arg2[%c0, %22] : memref<8x256xf32, #tpu.memory_space<vmem>>, vector<8x128xf32>
        %c0_13 = arith.constant 0 : index
        %24 = arith.index_cast %21 : i32 to index
        %25 = vector.load %arg3[%c0_13, %24] : memref<8x256xf32, #tpu.memory_space<vmem>>, vector<8x128xf32>
        %c128_i32_14 = arith.constant 128 : i32
        %26 = arith.muli %19, %c128_i32_14 : i32
        %27 = arith.addi %5, %26 : i32
        %28 = vector.broadcast %27 : i32 to vector<8x128xi32>
        %29 = arith.addi %28, %16 : vector<8x128xi32>
        %c256_i32_15 = arith.constant 256 : i32
        %30 = vector.broadcast %c256_i32_15 : i32 to vector<8x128xi32>
        %31 = arith.cmpi slt, %29, %30 : vector<8x128xi32>
        %cst = arith.constant 0.000000e+00 : f32
        %32 = vector.broadcast %cst : f32 to vector<8x128xf32>
        %33 = arith.select %31, %23, %32 : vector<8x128xi1>, vector<8x128xf32>
        %cst_16 = arith.constant 0.000000e+00 : f32
        %34 = vector.broadcast %cst_16 : f32 to vector<8x128xf32>
        %35 = arith.select %31, %25, %34 : vector<8x128xi1>, vector<8x128xf32>
        %c0_17 = arith.constant 0 : index
        %c0_18 = arith.constant 0 : index
        %c0_19 = arith.constant 0 : index
        %c0_20 = arith.constant 0 : index
        %36 = vector.load %arg4[%c0_17, %c0_18, %c0_19, %c0_20] : memref<1x3x8x128xf32, #tpu.memory_space<vmem>>, vector<1x1x8x128xf32>
        %37 = vector.shape_cast %36 : vector<1x1x8x128xf32> to vector<8x128xf32>
        %38 = arith.addf %37, %35 : vector<8x128xf32>
        %c0_21 = arith.constant 0 : index
        %c0_22 = arith.constant 0 : index
        %c0_23 = arith.constant 0 : index
        %c0_24 = arith.constant 0 : index
        %39 = vector.load %arg4[%c0_21, %c0_22, %c0_23, %c0_24] : memref<1x3x8x128xf32, #tpu.memory_space<vmem>>, vector<1x1x8x128xf32>
        %40 = vector.shape_cast %39 : vector<1x1x8x128xf32> to vector<8x128xf32>
        %41 = vector.shape_cast %38 : vector<8x128xf32> to vector<1x1x8x128xf32>
        tpu.vector_store %arg4[%c0_21, %c0_22, %c0_23, %c0_24], %41 {strides = array<i32>} : memref<1x3x8x128xf32, #tpu.memory_space<vmem>>, vector<1x1x8x128xf32>,
        %c0_25 = arith.constant 0 : index
        %c1 = arith.constant 1 : index
        %c0_26 = arith.constant 0 : index
        %c0_27 = arith.constant 0 : index
        %42 = vector.load %arg4[%c0_25, %c1, %c0_26, %c0_27] : memref<1x3x8x128xf32, #tpu.memory_space<vmem>>, vector<1x1x8x128xf32>
        %43 = vector.shape_cast %42 : vector<1x1x8x128xf32> to vector<8x128xf32>
        %44 = arith.addf %43, %33 : vector<8x128xf32>
        %c0_28 = arith.constant 0 : index
        %c1_29 = arith.constant 1 : index
        %c0_30 = arith.constant 0 : index
        %c0_31 = arith.constant 0 : index
        %45 = vector.load %arg4[%c0_28, %c1_29, %c0_30, %c0_31] : memref<1x3x8x128xf32, #tpu.memory_space<vmem>>, vector<1x1x8x128xf32>
        %46 = vector.shape_cast %45 : vector<1x1x8x128xf32> to vector<8x128xf32>
        %47 = vector.shape_cast %44 : vector<8x128xf32> to vector<1x1x8x128xf32>
        tpu.vector_store %arg4[%c0_28, %c1_29, %c0_30, %c0_31], %47 {strides = array<i32>} : memref<1x3x8x128xf32, #tpu.memory_space<vmem>>, vector<1x1x8x128xf32>,
        %c0_32 = arith.constant 0 : index
        %c2 = arith.constant 2 : index
        %c0_33 = arith.constant 0 : index
        %c0_34 = arith.constant 0 : index
        %48 = vector.load %arg4[%c0_32, %c2, %c0_33, %c0_34] : memref<1x3x8x128xf32, #tpu.memory_space<vmem>>, vector<1x1x8x128xf32>
        %49 = vector.shape_cast %48 : vector<1x1x8x128xf32> to vector<8x128xf32>
        %50 = arith.mulf %33, %35 : vector<8x128xf32>
        %51 = arith.addf %49, %50 : vector<8x128xf32>
        %c0_35 = arith.constant 0 : index
        %c2_36 = arith.constant 2 : index
        %c0_37 = arith.constant 0 : index
        %c0_38 = arith.constant 0 : index
        %52 = vector.load %arg4[%c0_35, %c2_36, %c0_37, %c0_38] : memref<1x3x8x128xf32, #tpu.memory_space<vmem>>, vector<1x1x8x128xf32>
        %53 = vector.shape_cast %52 : vector<1x1x8x128xf32> to vector<8x128xf32>
        %54 = vector.shape_cast %51 : vector<8x128xf32> to vector<1x1x8x128xf32>
        tpu.vector_store %arg4[%c0_35, %c2_36, %c0_37, %c0_38], %54 {strides = array<i32>} : memref<1x3x8x128xf32, #tpu.memory_space<vmem>>, vector<1x1x8x128xf32>,
      }
      %c2_i32_10 = arith.constant 2 : i32
    } else {
    }
    return
  }
  func.func @transform_0(%arg0: i32, %arg1: i32) -> (i32, i32) {
    %c1_i32 = arith.constant 1 : i32
    %0 = arith.muli %arg0, %c1_i32 : i32
    %1 = arith.addi %0, %arg1 : i32
    %c0_i32 = arith.constant 0 : i32
    %2 = arith.minsi %1, %c0_i32 : i32
    %c0_i32_0 = arith.constant 0 : i32
    %c0_i32_1 = arith.constant 0 : i32
    return %c0_i32_0, %2 : i32, i32
  }
  func.func @transform_1(%arg0: i32, %arg1: i32) -> (i32, i32) {
    %c1_i32 = arith.constant 1 : i32
    %0 = arith.muli %arg0, %c1_i32 : i32
    %1 = arith.addi %0, %arg1 : i32
    %c0_i32 = arith.constant 0 : i32
    %2 = arith.minsi %1, %c0_i32 : i32
    %c0_i32_0 = arith.constant 0 : i32
    %c0_i32_1 = arith.constant 0 : i32
    return %c0_i32_0, %2 : i32, i32
  }
  func.func @transform_2(%arg0: i32, %arg1: i32) -> (i32, i32, i32, i32) {
    %c0_i32 = arith.constant 0 : i32
    %c0_i32_0 = arith.constant 0 : i32
    %c0_i32_1 = arith.constant 0 : i32
    %c0_i32_2 = arith.constant 0 : i32
    return %arg0, %c0_i32, %c0_i32_0, %c0_i32_1 : i32, i32, i32, i32
  }
}

</mosaic_0001>

<llo_original>
// kernel: generalized_dice_loss.1
$region0: #{generalized_dice_loss.1}
  #allocation0 [shape = 'u32[]', space=smem, size = 0x4, offset = 0x4, fixed_abs, tag = 'smem constant byte address 0x4 - core index']
  #allocation1 [shape = 'u32[144,128]{1,0:T(1,128)}', space=vmem, size = 0x12000, scoped, tag = 'internal scratch']
  %s0 = inlined_call_operand.vmem [shape: f32[8,256], index: 0, kind: input, shape index: {}]
  %s1 = inlined_call_operand.vmem [shape: f32[8,256], index: 1, kind: input, shape index: {}]
  %s2 = inlined_call_operand.vmem [shape: f32[1,3,8,128], index: 2, kind: output, shape index: {}]
  %s3 = sld [smem:[#allocation0]]
  $region37: #{generalized_dice_loss.1} parent=0
    _
  %s5 = ssub.s32 1, %s3
  %s6 = scalar_select 0, %s5, %s3
  // Predicated region
  $region2: #{generalized_dice_loss.1} parent=0 // pred_check
    _
  $region3: #{generalized_dice_loss.1} parent=0 // pred_check_branch
    %8 = sbr.rel (0) target = $region5
  $region4: #{generalized_dice_loss.1} parent=0 // pred_region
    %s9 = sadd.s32 0, 0
    %p10 = scmp.lt.s32.totalorder %s9, 0
    %s11 = scalar_select %p10, %s9, 0
    %s12 = smul.u32 2, %s11
    %p13 = scmp.lt.s32.totalorder %s12, 1
    %s14 = scalar_select %p13, %s12, 1
    %s15 = smul.addr %s14, 8
    %s16 = scalar_lea.vmem %s0, %s15
    %s17 = sadd.s32 0, 0
    %p18 = scmp.lt.s32.totalorder %s17, 0
    %s19 = scalar_select %p18, %s17, 0
    %s20 = smul.u32 2, %s19
  $region5: #{generalized_dice_loss.1} parent=0 // pred_fallthru
    _
  // Predicated region
  $region6: #{generalized_dice_loss.1} parent=0 // pred_check
    _
  $region7: #{generalized_dice_loss.1} parent=0 // pred_check_branch
    %22 = sbr.rel (0) target = $region9
  $region8: #{generalized_dice_loss.1} parent=0 // pred_region
    %s23 = sadd.s32 0, 0
    %p24 = scmp.lt.s32.totalorder %s23, 0
    %s25 = scalar_select %p24, %s23, 0
    %s26 = smul.u32 2, %s25
    %p27 = scmp.lt.s32.totalorder %s26, 1
    %s28 = scalar_select %p27, %s26, 1
    %s29 = smul.addr %s28, 8
    %s30 = scalar_lea.vmem %s1, %s29
    %s31 = sadd.s32 0, 0
    %p32 = scmp.lt.s32.totalorder %s31, 0
    %s33 = scalar_select %p32, %s31, 0
    %s34 = smul.u32 2, %s33
  $region9: #{generalized_dice_loss.1} parent=0 // pred_fallthru
    _
  %s35 = sadd.s32 0, 0
  %p36 = scmp.lt.s32.totalorder %s35, 0
  %s37 = scalar_select %p36, %s35, 0
  %s38 = smul.u32 2, %s37
  %p39 = scmp.lt.s32.totalorder %s38, 1
  %s40 = scalar_select %p39, %s38, 1
  %s41 = smul.addr %s40, 8
  %s42 = scalar_lea.vmem %s0, %s41
  %s43 = sadd.s32 0, 0
  %p44 = scmp.lt.s32.totalorder %s43, 0
  %s45 = scalar_select %p44, %s43, 0
  %s46 = smul.u32 2, %s45
  %p47 = scmp.lt.s32.totalorder %s46, 1
  %s48 = scalar_select %p47, %s46, 1
  %s49 = smul.addr %s48, 8
  %s50 = scalar_lea.vmem %s1, %s49
  %s51 = sadd.s32 0, 0
  %p52 = scmp.lt.s32.totalorder %s51, 0
  %s53 = scalar_select %p52, %s51, 0
  %s54 = smul.u32 2, %s53
  %p55 = scmp.lt.s32.totalorder %s54, 1
  %s56 = scalar_select %p55, %s54, 1
  %s57 = smul.addr %s56, 8
  %s58 = scalar_lea.vmem %s0, %s57
  %s59 = sadd.s32 0, 0
  %p60 = scmp.lt.s32.totalorder %s59, 0
  %s61 = scalar_select %p60, %s59, 0
  %s62 = smul.u32 2, %s61
  %s63 = sadd.s32 0, 0
  %p64 = scmp.lt.s32.totalorder %s63, 0
  %s65 = scalar_select %p64, %s63, 0
  %s66 = smul.u32 2, %s65
  %p67 = scmp.lt.s32.totalorder %s66, 1
  %s68 = scalar_select %p67, %s66, 1
  %s69 = smul.addr %s68, 8
  %s70 = scalar_lea.vmem %s1, %s69
  %s71 = sadd.s32 0, 0
  %p72 = scmp.lt.s32.totalorder %s71, 0
  %s73 = scalar_select %p72, %s71, 0
  %s74 = smul.u32 2, %s73
  %p75 = scmp.eq.s32.totalorder 0, 0
  // Predicated region
  $region10: #{generalized_dice_loss.1} parent=0 // pred_check
    %p76 = pneg %p75
  $region11: #{generalized_dice_loss.1} parent=0 // pred_check_branch
    %78 = sbr.rel (%p76) target = $region13
  $region12: #{generalized_dice_loss.1} parent=0 // pred_region
    %79 = vst [vmem:[%s2] sm:$0xff] 0.0
    %80 = vst [vmem:[%s2 + $0x8] sm:$0xff] 0.0
    %81 = vst [vmem:[%s2 + $0x10] sm:$0xff] 0.0
  $region13: #{generalized_dice_loss.1} parent=0 // pred_fallthru
    _
  %s82 = sadd.s32 0, 0
  %s83 = smul.u32 %s82, 256
  %s84 = sadd.s32 %s83, 256
  %p85 = scmp.le.s32.totalorder %s84, 256
  // Predicated region
  $region14: #{generalized_dice_loss.1} parent=0 // pred_check
    %p86 = pneg %p85
  $region15: #{generalized_dice_loss.1} parent=0 // pred_check_branch
    %88 = sbr.rel (%p86) target = $region17
  $region16: #{generalized_dice_loss.1} parent=0 // pred_region
    %v89 = vld [vmem:[%s58] sm:$0xff]
    %v90 = vld [vmem:[%s70] sm:$0xff]
    %v91 = vadd.f32 %v90, 0.0
    %v92 = vadd.f32 %v89, 0.0
    %v93 = vmul.f32 %v89, %v90
    %v94 = vadd.f32 %v93, 0.0
    %s95 = scalar_lea.vmem %s58, 8
    %v96 = vld [vmem:[%s95] sm:$0xff]
    %s97 = scalar_lea.vmem %s70, 8
    %v98 = vld [vmem:[%s97] sm:$0xff]
    %v99 = vadd.f32 %v91, %v98
    %v100 = vadd.f32 %v92, %v96
    %v101 = vmul.f32 %v96, %v98
    %v102 = vadd.f32 %v94, %v101
    %v103 = vld [vmem:[%s2] sm:$0xff]
    %v104 = vadd.f32 %v103, %v99
    %105 = vst [vmem:[%s2] sm:$0xff] %v104
    %s106 = scalar_lea.vmem %s2, 8
    %v107 = vld [vmem:[%s106] sm:$0xff]
    %v108 = vadd.f32 %v107, %v100
    %109 = vst [vmem:[%s106] sm:$0xff] %v108
    %s110 = scalar_lea.vmem %s2, 16
    %v111 = vld [vmem:[%s110] sm:$0xff]
    %v112 = vadd.f32 %v111, %v102
    %113 = vst [vmem:[%s110] sm:$0xff] %v112
  $region17: #{generalized_dice_loss.1} parent=0 // pred_fallthru
    _
  %p114 = scmp.lt.s32.totalorder %s83, 256
  %p115 = scmp.gt.s32.totalorder %s84, 256
  %p116 = pnand %p114, %p115
  %p117 = pneg %p116
  // Predicated region
  $region18: #{generalized_dice_loss.1} parent=0 // pred_check
    _
  $region19: #{generalized_dice_loss.1} parent=0 // pred_check_branch
    %119 = sbr.rel (%p116) target = $region21
  $region20: #{generalized_dice_loss.1} parent=0 // pred_region
    %v120 = vlaneseq
    %v121 = vand.u32 %v120, 127
    loop: start=0, step=1, limit=2
    $region22: #{generalized_dice_loss.1} parent=20 // loop_pre_header
      _
    $region23: #{generalized_dice_loss.1} parent=20 // loop_header
      %s123 = sphi 0, %s127
      %p124 = scmp.ge.s32.totalorder %s123, 2
    $region24: #{generalized_dice_loss.1} parent=20 // loop_header_branch
      %126 = sbr.rel (%p124) target = $region28
    $region25: #{generalized_dice_loss.1} parent=20 // loop_body
      %s128 = smul.u32 %s123, 128
      %s129 = sshra.s32 %s128, 7
      %s130 = sand.u32 %s128, 127
      %s131 = smul.addr %s129, 8
      %s132 = scalar_lea.vmem %s58, %s131
      %v133 = vld [vmem:[%s132] sm:$0xff]
      %s134 = smul.addr %s129, 8
      %s135 = scalar_lea.vmem %s70, %s134
      %v136 = vld [vmem:[%s135] sm:$0xff]
      %s137 = sadd.s32 %s83, %s128
      %v138 = vstv %s137
      %v139 = vadd.s32 %v138, %v121
      %vm140 = vcmp.lt.s32.totalorder %v139, 256
      %v141 = vsel %vm140, %v133, 0.0
      %v142 = vsel %vm140, %v136, 0.0
      %v143 = vld [vmem:[%s2] sm:$0xff]
      %v144 = vadd.f32 %v143, %v142
      %145 = vst [vmem:[%s2] sm:$0xff] %v144
      %s146 = scalar_lea.vmem %s2, 8
      %v147 = vld [vmem:[%s146] sm:$0xff]
      %v148 = vadd.f32 %v147, %v141
      %149 = vst [vmem:[%s146] sm:$0xff] %v148
      %s150 = scalar_lea.vmem %s2, 16
      %v151 = vld [vmem:[%s150] sm:$0xff]
      %v152 = vmul.f32 %v141, %v142
      %v153 = vadd.f32 %v151, %v152
      %154 = vst [vmem:[%s150] sm:$0xff] %v153
    $region26: #{generalized_dice_loss.1} parent=20 // loop_footer
      %s127 = sadd.s32 1, %s123
    $region27: #{generalized_dice_loss.1} parent=20 // loop_footer_branch
      %122 = sbr.rel target = $region23
    $region28: #{generalized_dice_loss.1} parent=20 // loop_exit
      _
  $region21: #{generalized_dice_loss.1} parent=0 // pred_fallthru
    _
  // Predicated region
  $region29: #{generalized_dice_loss.1} parent=0 // pred_check
    _
  $region30: #{generalized_dice_loss.1} parent=0 // pred_check_branch
    %156 = sbr.rel (0) target = $region32
  $region31: #{generalized_dice_loss.1} parent=0 // pred_region
    _
  $region32: #{generalized_dice_loss.1} parent=0 // pred_fallthru
    _
  // Predicated region
  $region33: #{generalized_dice_loss.1} parent=0 // pred_check
    _
  $region34: #{generalized_dice_loss.1} parent=0 // pred_check_branch
    %158 = sbr.rel (0) target = $region36
  $region35: #{generalized_dice_loss.1} parent=0 // pred_region
    _
  $region36: #{generalized_dice_loss.1} parent=0 // pred_fallthru
    _

</llo_original>
